<compile_context>
chip_gen: v7x
topology: tpu7x:2x2x1
jax: 0.10.0
libtpu: 0.0.40
codegen_flags: <defaults>
</compile_context>

<pallas_src>
import functools

import jax
import jax.numpy as jnp
from jax.experimental import pallas as pl
from jax.experimental.pallas import tpu as pltpu


def _round_up(n, m):
    return ((n + m - 1) // m) * m


# ---------------------------------------------------------------------------
# Forward: y = x @ W^T + b
# ---------------------------------------------------------------------------
def _linear_kernel(x_ref, wt_ref, b_ref, o_ref):
    # x_ref:  (tb, D) VMEM  batch tile (last block may be partially OOB)
    # wt_ref: (D, 1)  VMEM  transposed weight, resident across grid steps
    # b_ref:  (1,)    SMEM  bias scalar
    # o_ref:  (tb, 1) VMEM  output tile (OOB rows masked on writeback)
    o_ref[...] = (
        jnp.dot(x_ref[...], wt_ref[...], preferred_element_type=jnp.float32)
        + b_ref[0]
    )


def _choose_batch_tile(B, D, *, x_vmem_budget_bytes, max_block_rows):
    # Double-buffered f32 x tile must fit the byte budget.
    bytes_per_row = 2 * 4 * D
    tb = x_vmem_budget_bytes // bytes_per_row
    tb = max(8, (tb // 8) * 8)
    tb = min(tb, max_block_rows)
    # No point making the tile larger than the (8-rounded) batch.
    tb = min(tb, _round_up(B, 8))
    return max(8, tb)


def linreg_forward(x, weight, bias, *,
                   max_block_rows=32768,
                   x_vmem_budget_bytes=16 * 1024 * 1024):
    """Forward pass of nn.Linear(input_dim, 1): y = x @ W^T + b.

    x:      (B, D) float32
    weight: (1, D) float32   (PyTorch nn.Linear(input_dim, 1).weight layout)
    bias:   (1,)   float32
    Returns y: (B, 1) float32.
    """
    B, D = x.shape
    assert weight.shape == (1, D)
    assert bias.shape == (1,)

    tb = _choose_batch_tile(B, D,
                            x_vmem_budget_bytes=x_vmem_budget_bytes,
                            max_block_rows=max_block_rows)
    grid = (pl.cdiv(B, tb),)

    y = pl.pallas_call(
        _linear_kernel,
        grid=grid,
        in_specs=[
            pl.BlockSpec((tb, D), lambda i: (i, 0)),            # x tile
            pl.BlockSpec((D, 1), lambda i: (0, 0)),             # W^T (resident)
            pl.BlockSpec(memory_space=pltpu.MemorySpace.SMEM),  # bias scalar
        ],
        out_specs=pl.BlockSpec((tb, 1), lambda i: (i, 0)),
        out_shape=jax.ShapeDtypeStruct((B, 1), jnp.float32),
        compiler_params=pltpu.CompilerParams(
            dimension_semantics=("parallel",),
            vmem_limit_bytes=32 * 1024 * 1024,
        ),
    )(x, weight.T, bias)
    return y


# ---------------------------------------------------------------------------
# Regularization loss: l1 * ||W||_1 + l2 * ||W||_2
# ---------------------------------------------------------------------------
def _reg_kernel(w_ref, reg_ref, *, l1_lambda, l2_lambda):
    w = w_ref[...].astype(jnp.float32)                 # (1, D)
    l1 = jnp.sum(jnp.abs(w))
    l2 = jnp.sqrt(jnp.sum(w * w))
    reg_ref[...] = (l1_lambda * l1 + l2_lambda * l2).reshape(1, 1)


def regularization_loss(weight, l1_lambda=0.01, l2_lambda=0.01):
    """l1_lambda * ||W||_1 + l2_lambda * ||W||_2 (same as torch.norm defaults)."""
    reg = pl.pallas_call(
        functools.partial(_reg_kernel,
                          l1_lambda=float(l1_lambda),
                          l2_lambda=float(l2_lambda)),
        out_shape=jax.ShapeDtypeStruct((1, 1), jnp.float32),
    )(weight)
    return reg[0, 0]


if __name__ == "__main__":
    # Small shapes implied by the module: batch=8, input_dim=32.
    B, D = 8, 32
    key = jax.random.PRNGKey(0)
    kx, kw, kb = jax.random.split(key, 3)

    x = jax.random.normal(kx, (B, D), dtype=jnp.float32)

    # Parameter init mimicking nn.Linear: U(-1/sqrt(D), 1/sqrt(D)).
    bound = 1.0 / jnp.sqrt(jnp.float32(D))
    weight = jax.random.uniform(kw, (1, D), jnp.float32, -bound, bound)
    bias = jax.random.uniform(kb, (1,), jnp.float32, -bound, bound)

    y = linreg_forward(x, weight, bias)
    reg = regularization_loss(weight, 0.01, 0.01)
    jax.block_until_ready((y, reg))

    # Reference check (plain JAX).
    y_ref = x @ weight.T + bias
    reg_ref = 0.01 * jnp.sum(jnp.abs(weight)) + 0.01 * jnp.sqrt(jnp.sum(weight * weight))
    assert y.shape == (B, 1)
    assert jnp.allclose(y, y_ref, atol=1e-5, rtol=1e-5)
    assert jnp.allclose(reg, reg_ref, atol=1e-6, rtol=1e-5)

    # Ragged multi-block batch (no padding copy): forces tb=256, grid=4 with a
    # partial (232-row) last block handled by masked OOB writes.
    B2 = 1000
    x2 = jax.random.normal(jax.random.PRNGKey(1), (B2, D), dtype=jnp.float32)
    y2 = linreg_forward(x2, weight, bias, max_block_rows=256)
    jax.block_until_ready(y2)
    y2_ref = x2 @ weight.T + bias
    assert y2.shape == (B2, 1)
    assert jnp.allclose(y2, y2_ref, atol=1e-5, rtol=1e-5)

    # Larger batch exercising the byte-budget tile choice (single deep tile).
    B3 = 4096
    x3 = jax.random.normal(jax.random.PRNGKey(2), (B3, D), dtype=jnp.float32)
    y3 = linreg_forward(x3, weight, bias)
    jax.block_until_ready(y3)
    y3_ref = x3 @ weight.T + bias
    assert jnp.allclose(y3, y3_ref, atol=1e-5, rtol=1e-5)

    print("KERNEL_OK")
</pallas_src>

<mosaic_0001>
module attributes {stable_mosaic.version = 11 : i64} {
  func.func @_linear_kernel(%arg0: i32, %arg1: memref<8x32xf32, #tpu.memory_space<vmem>>, %arg2: memref<32x1xf32, #tpu.memory_space<vmem>>, %arg3: memref<1xf32, #tpu.memory_space<smem>>, %arg4: memref<8x1xf32, #tpu.memory_space<vmem>>) attributes {dimension_semantics = [#tpu.dimension_semantics<parallel>], iteration_bounds = array<i64: 1>, scalar_prefetch = 0 : i64, scratch_operands = 0 : i64, tpu.core_type = #tpu.core_type<tc>, window_params = [{transform_indices = @transform_0, window_bounds = array<i64: 8, 32>}, {pipeline_mode = #tpu.pipeline_mode<synchronous>, transform_indices = @transform_1, window_bounds = array<i64: 32, 1>}, {transform_indices = @transform_2, window_bounds = array<i64: 1>}, {transform_indices = @transform_3, window_bounds = array<i64: 8, 1>}]} {
    %c0 = arith.constant 0 : index
    %c0_0 = arith.constant 0 : index
    %0 = vector.load %arg1[%c0, %c0_0] : memref<8x32xf32, #tpu.memory_space<vmem>>, vector<8x32xf32>
    %c0_1 = arith.constant 0 : index
    %c0_2 = arith.constant 0 : index
    %1 = vector.load %arg2[%c0_1, %c0_2] : memref<32x1xf32, #tpu.memory_space<vmem>>, vector<32x1xf32>
    %cst = arith.constant dense<0.000000e+00> : vector<8x1xf32>
    %2 = tpu.matmul %0, %1, %cst {dimension_numbers = #tpu.dot_dimension_numbers<[1], [0], [0], [1], [0, 0, 1, 1], [], []>} : vector<8x32xf32>, vector<32x1xf32>, vector<8x1xf32> -> vector<8x1xf32>
    %c0_3 = arith.constant 0 : index
    %3 = memref.load %arg3[%c0_3] : memref<1xf32, #tpu.memory_space<smem>>
    %4 = vector.broadcast %3 : f32 to vector<8x1xf32>
    %5 = arith.addf %2, %4 : vector<8x1xf32>
    %c0_4 = arith.constant 0 : index
    %c0_5 = arith.constant 0 : index
    %6 = vector.load %arg4[%c0_4, %c0_5] : memref<8x1xf32, #tpu.memory_space<vmem>>, vector<8x1xf32>
    tpu.vector_store %arg4[%c0_4, %c0_5], %5 {strides = array<i32>} : memref<8x1xf32, #tpu.memory_space<vmem>>, vector<8x1xf32>,
    return
  }
  func.func @transform_0(%arg0: i32) -> (i32, i32) {
    %c0_i32 = arith.constant 0 : i32
    %c0_i32_0 = arith.constant 0 : i32
    return %arg0, %c0_i32 : i32, i32
  }
  func.func @transform_1(%arg0: i32) -> (i32, i32) {
    %c0_i32 = arith.constant 0 : i32
    %c0_i32_0 = arith.constant 0 : i32
    %c0_i32_1 = arith.constant 0 : i32
    return %c0_i32, %c0_i32_0 : i32, i32
  }
  func.func @transform_2(%arg0: i32) -> i32 {
    %c0_i32 = arith.constant 0 : i32
    %c0_i32_0 = arith.constant 0 : i32
    return %c0_i32 : i32
  }
  func.func @transform_3(%arg0: i32) -> (i32, i32) {
    %c0_i32 = arith.constant 0 : i32
    %c0_i32_0 = arith.constant 0 : i32
    return %arg0, %c0_i32 : i32, i32
  }
}

</mosaic_0001>

<llo_original>
// kernel: tpu_custom_call.1
$region0: #{tpu_custom_call.1}
  #allocation0 [shape = 'u32[]', space=smem, size = 0x4, offset = 0x4, fixed_abs, tag = 'smem constant byte address 0x4 - core index']
  #allocation1 [shape = 'u32[144,128]{1,0:T(1,128)}', space=vmem, size = 0x12000, scoped, tag = 'internal scratch']
  #allocation2 [shape = 'f32[1]{0:T(128)S(6)}', space=smem, size = 0x200, scoped, tag = 'scoped memory for tpu_custom_call.1']
  %s0 = inlined_call_operand.vmem [shape: f32[8,32], index: 0, kind: input, shape index: {}]
  %s1 = inlined_call_operand.vmem [shape: f32[32,1], index: 1, kind: input, shape index: {}]
  %s2 = inlined_call_operand.<no memory space> [shape: f32[1], index: 2, kind: input, shape index: {}]
  %s3 = inlined_call_operand.vmem [shape: f32[8,1], index: 3, kind: output, shape index: {}]
  %s4 = sld [smem:[#allocation0]]
  $region22: #{tpu_custom_call.1} parent=0
    _
  %s6 = ssub.s32 1, %s4
  %s7 = scalar_select 0, %s6, %s4
  %8 = sst [smem:[#allocation2]] %s2
  // Predicated region
  $region2: #{tpu_custom_call.1} parent=0 // pred_check
    _
  $region3: #{tpu_custom_call.1} parent=0 // pred_check_branch
    %10 = sbr.rel (0) target = $region5
  $region4: #{tpu_custom_call.1} parent=0 // pred_region
    _
  $region5: #{tpu_custom_call.1} parent=0 // pred_fallthru
    _
  // Predicated region
  $region6: #{tpu_custom_call.1} parent=0 // pred_check
    _
  $region7: #{tpu_custom_call.1} parent=0 // pred_check_branch
    %12 = sbr.rel (0) target = $region9
  $region8: #{tpu_custom_call.1} parent=0 // pred_region
    _
  $region9: #{tpu_custom_call.1} parent=0 // pred_fallthru
    _
  // Predicated region
  $region10: #{tpu_custom_call.1} parent=0 // pred_check
    _
  $region11: #{tpu_custom_call.1} parent=0 // pred_check_branch
    %14 = sbr.rel (0) target = $region13
  $region12: #{tpu_custom_call.1} parent=0 // pred_region
    _
  $region13: #{tpu_custom_call.1} parent=0 // pred_fallthru
    _
  %v15 = vld [vmem:[%s0] sm:$0xff]
  %v16 = vld [vmem:[%s1] sm:$0xff]
  %v17 = vld [vmem:[%s1 + $0x8] sm:$0xff]
  %v18 = vld [vmem:[%s1 + $0x10] sm:$0xff]
  %v19 = vld [vmem:[%s1 + $0x18] sm:$0xff]
  %s20 = sld [smem:[#allocation2]]
  %v21 = vstv %s20
  %vm22 = vcmask 261120
  %v24 = vsel %vm22, %v15, 0
  %26 = vmatprep.subr.mxu0 0.0
  %27 = vmatpush1.msra.mxu0 %v16
  %28 = vmatprep.subr.mxu0 0.0
  %29 = vmatpush1.msra.mxu0 %v17
  %30 = vmatprep.subr.mxu0 0.0
  %31 = vmatpush1.msra.mxu0 %v18
  %32 = vmatprep.subr.mxu0 0.0
  %33 = vmatpush1.msra.mxu0 %v19
  %34 = vmatprep.subr.mxu0 0.0
  %35 = vmatpush1.msra.mxu0 0.0
  %36 = vmatprep.subr.mxu0 0.0
  %37 = vmatpush1.msra.mxu0 0.0
  %38 = vmatprep.subr.mxu0 0.0
  %39 = vmatpush1.msra.mxu0 0.0
  %40 = vmatprep.subr.mxu0 0.0
  %41 = vmatpush1.msra.mxu0 0.0
  %42 = vmatprep.subr.mxu0 0.0
  %43 = vmatpush1.msra.mxu0 0.0
  %44 = vmatprep.subr.mxu0 0.0
  %45 = vmatpush1.msra.mxu0 0.0
  %46 = vmatprep.subr.mxu0 0.0
  %47 = vmatpush1.msra.mxu0 0.0
  %48 = vmatprep.subr.mxu0 0.0
  %49 = vmatpush1.msra.mxu0 0.0
  %50 = vmatprep.subr.mxu0 0.0
  %51 = vmatpush1.msra.mxu0 0.0
  %52 = vmatprep.subr.mxu0 0.0
  %53 = vmatpush1.msra.mxu0 0.0
  %54 = vmatprep.subr.mxu0 0.0
  %55 = vmatpush1.msra.mxu0 0.0
  %56 = vmatprep.subr.mxu0 0.0
  %57 = vmatpush1.msra.mxu0 0.0
  %58 = vmatprep.subr.mxu0 0.0
  %59 = vmatpush1.msra.mxu0 0.0
  %60 = vmatprep.subr.mxu0 0.0
  %61 = vmatpush1.msra.mxu0 0.0
  %62 = vmatprep.subr.mxu0 0.0
  %63 = vmatpush1.msra.mxu0 0.0
  %64 = vmatprep.subr.mxu0 0.0
  %65 = vmatpush1.msra.mxu0 0.0
  %66 = vmatprep.subr.mxu0 0.0
  %67 = vmatpush1.msra.mxu0 0.0
  %68 = vmatprep.subr.mxu0 0.0
  %69 = vmatpush1.msra.mxu0 0.0
  %70 = vmatprep.subr.mxu0 0.0
  %71 = vmatpush1.msra.mxu0 0.0
  %72 = vmatprep.subr.mxu0 0.0
  %73 = vmatpush1.msra.mxu0 0.0
  %74 = vmatprep.subr.mxu0 0.0
  %75 = vmatpush1.msra.mxu0 0.0
  %76 = vmatprep.subr.mxu0 0.0
  %77 = vmatpush1.msra.mxu0 0.0
  %78 = vmatprep.subr.mxu0 0.0
  %79 = vmatpush1.msra.mxu0 0.0
  %80 = vmatprep.subr.mxu0 0.0
  %81 = vmatpush1.msra.mxu0 0.0
  %82 = vmatprep.subr.mxu0 0.0
  %83 = vmatpush1.msra.mxu0 0.0
  %84 = vmatprep.subr.mxu0 0.0
  %85 = vmatpush1.msra.mxu0 0.0
  %86 = vmatprep.subr.mxu0 0.0
  %87 = vmatpush1.msra.mxu0 0.0
  %88 = vmatprep.subr.mxu0 0.0
  %89 = vmatpush1.msra.mxu0 0.0
  %90 = vmatprep.mubr.f32.mxu0 0.0
  %91 = vmatmul.mubr.f32.gmra.mrb[0].mxu0 %v24
  %v92 = vpop.f32.mrb[0].mxu0
  %v93 = vadd.f32 %v21, %v92
  %v94 = vpop.f32.mrb[0].mxu0
  %95 = vdwg.mxu0
  %vm96 = vcmask 7168
  %97 = vst.msk [vmem:[%s3] sm:$0xff] %vm96, %v93
  // Predicated region
  $region14: #{tpu_custom_call.1} parent=0 // pred_check
    _
  $region15: #{tpu_custom_call.1} parent=0 // pred_check_branch
    %99 = sbr.rel (0) target = $region17
  $region16: #{tpu_custom_call.1} parent=0 // pred_region
    _
  $region17: #{tpu_custom_call.1} parent=0 // pred_fallthru
    _
  // Predicated region
  $region18: #{tpu_custom_call.1} parent=0 // pred_check
    _
  $region19: #{tpu_custom_call.1} parent=0 // pred_check_branch
    %101 = sbr.rel (0) target = $region21
  $region20: #{tpu_custom_call.1} parent=0 // pred_region
    _
  $region21: #{tpu_custom_call.1} parent=0 // pred_fallthru
    _

</llo_original>
